<compile_context>
chip_gen: v7x
topology: tpu7x:2x2x1
jax: 0.10.0
libtpu: 0.0.40
codegen_flags: <defaults>
</compile_context>

<pallas_src>
import math

import jax
import jax.numpy as jnp
from jax.experimental import pallas as pl
from jax.experimental.pallas import tpu as pltpu

_BN_EPS = 1e-5
_LANES = 128
_SUBLANES_K = 16          # K-dim pad granule (covers bf16's 16-row packing)


def _round_up(x, m):
    return ((x + m - 1) // m) * m


def _conv_residual_kernel(
    x0mm_ref,          # [N, io_k_pad]  matmul dtype (resident, pre-cast once)
    x0res_ref,         # [N, tj]        f32 residual tile (resident across k)
    w1t_ref,           # [io_k_pad, tk] matmul dtype (streamed over k)
    gb1_ref,           # [2, tk]        f32: row0=gamma1, row1=beta1
    w2t_ref,           # [tk, tj]       matmul dtype (streamed over k)
    gb2_ref,           # [2, tj]        f32: row0=gamma2, row1=beta2
    o_ref,             # [N, tj]        f32; doubles as the block-2 accumulator
):
    k = pl.program_id(1)
    n_rows = x0mm_ref.shape[0]
    inv_n = 1.0 / n_rows

    # ---- block 1 (this hidden tile): linear -> BN(batch stats) -> ReLU ----
    h = jnp.dot(x0mm_ref[...], w1t_ref[...], preferred_element_type=jnp.float32)
    mu1 = jnp.sum(h, axis=0, keepdims=True) * inv_n
    d1 = h - mu1
    var1 = jnp.sum(d1 * d1, axis=0, keepdims=True) * inv_n       # two-pass, stable
    scale1 = gb1_ref[0:1, :] * jax.lax.rsqrt(var1 + _BN_EPS)     # [1, tk]
    shift1 = gb1_ref[1:2, :] - mu1 * scale1
    h = jnp.maximum(h * scale1 + shift1, 0.0)

    # ---- block 2 partial: accumulate this hidden tile's contribution ----
    # o_ref's block index is constant along k, so it stays resident in VMEM and
    # serves as the f32 accumulator (no separate scratch slab).
    y_part = jnp.dot(h.astype(w2t_ref.dtype), w2t_ref[...],
                     preferred_element_type=jnp.float32)

    @pl.when(k == 0)
    def _():
        o_ref[...] = y_part

    @pl.when(k > 0)
    def _():
        o_ref[...] += y_part

    # ---- finalize on the last hidden tile: BN2 -> +x0 -> ReLU ----
    @pl.when(k == pl.num_programs(1) - 1)
    def _():
        y = o_ref[...]
        mu2 = jnp.sum(y, axis=0, keepdims=True) * inv_n
        d2 = y - mu2
        var2 = jnp.sum(d2 * d2, axis=0, keepdims=True) * inv_n
        scale2 = gb2_ref[0:1, :] * jax.lax.rsqrt(var2 + _BN_EPS)
        shift2 = gb2_ref[1:2, :] - mu2 * scale2
        o_ref[...] = jnp.maximum(y * scale2 + shift2 + x0res_ref[...], 0.0)


def prepare_params(params, *, tk=256, matmul_dtype=jnp.bfloat16):
    """One-time prep: transpose, pad, pack and cast the weights.

    Biases b1/b2 are intentionally NOT forwarded: a per-feature bias right
    before training-mode BatchNorm is cancelled exactly by the mean
    subtraction, so the math is identical without them.
    """
    w1 = params["w1"]                     # [hid, io]  (PyTorch layout)
    w2 = params["w2"]                     # [io, hid]
    hid, io = w1.shape

    io_k_pad = _round_up(io, _SUBLANES_K)  # K dim of matmul 1 (sublane pad only)
    io_pad = _round_up(io, _LANES)         # output / residual lane dim
    hid_pad = _round_up(hid, tk)

    def pad2(a, r, c):
        return jnp.pad(a, ((0, r - a.shape[0]), (0, c - a.shape[1])))

    def pad1(a, n):
        return jnp.pad(a, (0, n - a.shape[0]))

    w1t = pad2(w1.T, io_k_pad, hid_pad).astype(matmul_dtype)   # [io_k_pad, hid_pad]
    w2t = pad2(w2.T, hid_pad, io_pad).astype(matmul_dtype)     # [hid_pad, io_pad]
    gb1 = jnp.stack([pad1(params["gamma1"], hid_pad),
                     pad1(params["beta1"], hid_pad)]).astype(jnp.float32)   # [2, hid_pad]
    gb2 = jnp.stack([pad1(params["gamma2"], io_pad),
                     pad1(params["beta2"], io_pad)]).astype(jnp.float32)    # [2, io_pad]

    return dict(io=io, hid=hid, io_k_pad=io_k_pad, io_pad=io_pad,
                hid_pad=hid_pad, tk=tk, matmul_dtype=matmul_dtype,
                w1t=w1t, gb1=gb1, w2t=w2t, gb2=gb2)


def _pick_tj(io_pad, tj_req):
    """Largest multiple of 128 that divides io_pad and is <= tj_req."""
    t = min(_round_up(tj_req, _LANES), io_pad)
    t = (t // _LANES) * _LANES
    while t > _LANES:
        if io_pad % t == 0:
            return t
        t -= _LANES
    return _LANES


def conv_residual_block(x0, edges, prep, *, tj=256,
                        vmem_limit_bytes=48 * 1024 * 1024):
    """x0: [N, io] f32. edges: unused (see TODO at top). prep: prepare_params()."""
    del edges  # TODO(synk): graph attention over edges not implemented.
    N, io = x0.shape
    assert io == prep["io"]
    io_k_pad, io_pad, hid_pad, tk = (prep["io_k_pad"], prep["io_pad"],
                                     prep["hid_pad"], prep["tk"])

    x0_f32 = x0.astype(jnp.float32)
    # Pre-cast matmul copy (hoists the per-grid-step cast out of the kernel);
    # only padded on the K dim to the sublane granule.
    x0_mm = jnp.pad(x0_f32, ((0, 0), (0, io_k_pad - io))).astype(prep["matmul_dtype"])
    # f32 residual copy, lane-padded to match the output tiles.
    x0_res = jnp.pad(x0_f32, ((0, 0), (0, io_pad - io)))

    tj_eff = _pick_tj(io_pad, tj)
    n_j = io_pad // tj_eff        # parallel axis over output-feature tiles
    n_k = hid_pad // tk           # reduction axis over hidden tiles

    out_pad = pl.pallas_call(
        _conv_residual_kernel,
        out_shape=jax.ShapeDtypeStruct((N, io_pad), jnp.float32),
        grid_spec=pltpu.PrefetchScalarGridSpec(
            num_scalar_prefetch=0,
            grid=(n_j, n_k),
            in_specs=[
                pl.BlockSpec((N, io_k_pad), lambda j, k: (0, 0)),  # x0 matmul copy
                pl.BlockSpec((N, tj_eff), lambda j, k: (0, j)),    # x0 residual tile
                pl.BlockSpec((io_k_pad, tk), lambda j, k: (0, k)), # w1t tile
                pl.BlockSpec((2, tk), lambda j, k: (0, k)),        # gamma1/beta1
                pl.BlockSpec((tk, tj_eff), lambda j, k: (k, j)),   # w2t tile
                pl.BlockSpec((2, tj_eff), lambda j, k: (0, j)),    # gamma2/beta2
            ],
            out_specs=pl.BlockSpec((N, tj_eff), lambda j, k: (0, j)),
        ),
        compiler_params=pltpu.CompilerParams(
            # j: independent output-feature tiles (megacore); k: hidden reduction.
            dimension_semantics=("parallel", "arbitrary"),
            vmem_limit_bytes=vmem_limit_bytes,
        ),
    )(x0_mm, x0_res, prep["w1t"], prep["gb1"], prep["w2t"], prep["gb2"])

    return out_pad[:, :io].astype(x0.dtype)


def init_params(key, io_node_num, hidden_node_num):
    """Deterministic synthetic init (kaiming-uniform-style bounds)."""
    k1, k2, k3, k4 = jax.random.split(key, 4)

    bound1 = math.sqrt(6.0 / io_node_num)
    w1 = jax.random.uniform(k1, (hidden_node_num, io_node_num),
                            minval=-bound1, maxval=bound1, dtype=jnp.float32)
    b1 = jax.random.uniform(k2, (hidden_node_num,),
                            minval=-bound1, maxval=bound1, dtype=jnp.float32)

    bound2 = math.sqrt(6.0 / hidden_node_num)
    w2 = jax.random.uniform(k3, (io_node_num, hidden_node_num),
                            minval=-bound2, maxval=bound2, dtype=jnp.float32)
    b2 = jax.random.uniform(k4, (io_node_num,),
                            minval=-bound2, maxval=bound2, dtype=jnp.float32)

    return {
        "w1": w1, "b1": b1,
        "gamma1": jnp.ones((hidden_node_num,), jnp.float32),
        "beta1": jnp.zeros((hidden_node_num,), jnp.float32),
        "w2": w2, "b2": b2,
        "gamma2": jnp.ones((io_node_num,), jnp.float32),
        "beta2": jnp.zeros((io_node_num,), jnp.float32),
    }


def _reference(x0, p):
    """Pure-JAX reference of the PyTorch forward (training-mode BN), WITH the
    biases — demonstrating that dropping them in the kernel is exact."""
    h = x0 @ p["w1"].T + p["b1"]
    mu = h.mean(0, keepdims=True)
    var = ((h - mu) ** 2).mean(0, keepdims=True)
    h = (h - mu) / jnp.sqrt(var + _BN_EPS) * p["gamma1"] + p["beta1"]
    h = jnp.maximum(h, 0.0)
    y = h @ p["w2"].T + p["b2"]
    mu = y.mean(0, keepdims=True)
    var = ((y - mu) ** 2).mean(0, keepdims=True)
    y = (y - mu) / jnp.sqrt(var + _BN_EPS) * p["gamma2"] + p["beta2"]
    return jnp.maximum(y + x0, 0.0)


if __name__ == "__main__":
    key = jax.random.PRNGKey(0)
    kx, kp = jax.random.split(key)

    batch = 8                 # BN statistics use the full (small) batch
    io_node_num = 16          # K-padded to 16 sublanes; output lane-padded to 128
    hidden_node_num = 192     # with tk=128 -> 2-step reduction grid

    x0 = jax.random.normal(kx, (batch, io_node_num), dtype=jnp.float32)
    params = init_params(kp, io_node_num, hidden_node_num)
    edges = None  # TODO(synk): MyTransformerConv / edge attention not defined in spec.

    ref = _reference(x0, params)

    # Exact-math path: f32 MXU inputs, tk=128 (exercises the 2-step reduction
    # grid and direct o_ref accumulation).  Must match the reference.
    prep_f32 = prepare_params(params, tk=128, matmul_dtype=jnp.float32)
    out_f32 = jax.block_until_ready(conv_residual_block(x0, edges, prep_f32))
    assert out_f32.shape == (batch, io_node_num)
    assert jnp.allclose(out_f32, ref, atol=1e-4, rtol=1e-4), "f32 mismatch vs reference"

    # Production default: bf16 MXU inputs (weights + pre-cast x0), tk=256,
    # f32 accumulation and BN math — loose check vs the f32 reference.
    prep_bf16 = prepare_params(params)
    out_bf16 = jax.block_until_ready(conv_residual_block(x0, edges, prep_bf16))
    assert out_bf16.shape == (batch, io_node_num)
    assert bool(jnp.all(jnp.isfinite(out_bf16)))
    assert jnp.allclose(out_bf16, ref, atol=1e-1, rtol=1e-1), "bf16 path far from reference"

    print("KERNEL_OK")
</pallas_src>

<mosaic_0001>
module attributes {stable_mosaic.version = 11 : i64} {
  func.func @_conv_residual_kernel(%arg0: i32, %arg1: i32, %arg2: memref<8x16xf32, #tpu.memory_space<vmem>>, %arg3: memref<8x128xf32, #tpu.memory_space<vmem>>, %arg4: memref<16x128xf32, #tpu.memory_space<vmem>>, %arg5: memref<2x128xf32, #tpu.memory_space<vmem>>, %arg6: memref<128x128xf32, #tpu.memory_space<vmem>>, %arg7: memref<2x128xf32, #tpu.memory_space<vmem>>, %arg8: memref<8x128xf32, #tpu.memory_space<vmem>>) attributes {dimension_semantics = [#tpu.dimension_semantics<parallel>, #tpu.dimension_semantics<arbitrary>], iteration_bounds = array<i64: 1, 2>, scalar_prefetch = 0 : i64, scratch_operands = 0 : i64, tpu.core_type = #tpu.core_type<tc>, window_params = [{pipeline_mode = #tpu.pipeline_mode<synchronous>, transform_indices = @transform_0, window_bounds = array<i64: 8, 16>}, {transform_indices = @transform_1, window_bounds = array<i64: 8, 128>}, {transform_indices = @transform_2, window_bounds = array<i64: 16, 128>}, {transform_indices = @transform_3, window_bounds = array<i64: 2, 128>}, {transform_indices = @transform_4, window_bounds = array<i64: 128, 128>}, {transform_indices = @transform_5, window_bounds = array<i64: 2, 128>}, {transform_indices = @transform_6, window_bounds = array<i64: 8, 128>}]} {
    %c0 = arith.constant 0 : index
    %c0_0 = arith.constant 0 : index
    %0 = vector.load %arg2[%c0, %c0_0] : memref<8x16xf32, #tpu.memory_space<vmem>>, vector<8x16xf32>
    %c0_1 = arith.constant 0 : index
    %c0_2 = arith.constant 0 : index
    %1 = vector.load %arg4[%c0_1, %c0_2] : memref<16x128xf32, #tpu.memory_space<vmem>>, vector<16x128xf32>
    %cst = arith.constant dense<0.000000e+00> : vector<8x128xf32>
    %2 = tpu.matmul %0, %1, %cst {dimension_numbers = #tpu.dot_dimension_numbers<[1], [0], [0], [1], [0, 0, 1, 1], [], []>} : vector<8x16xf32>, vector<16x128xf32>, vector<8x128xf32> -> vector<8x128xf32>
    %cst_3 = arith.constant dense<0.000000e+00> : vector<128xf32>
    %3 = vector.multi_reduction <add>, %2, %cst_3 [0] : vector<8x128xf32> to vector<128xf32>
    %4 = vector.shape_cast %3 : vector<128xf32> to vector<1x128xf32>
    %cst_4 = arith.constant 1.250000e-01 : f32
    %5 = vector.broadcast %cst_4 : f32 to vector<1x128xf32>
    %6 = arith.mulf %4, %5 : vector<1x128xf32>
    %7 = vector.broadcast %6 : vector<1x128xf32> to vector<8x128xf32>
    %8 = arith.subf %2, %7 : vector<8x128xf32>
    %9 = arith.mulf %8, %8 : vector<8x128xf32>
    %cst_5 = arith.constant dense<0.000000e+00> : vector<128xf32>
    %10 = vector.multi_reduction <add>, %9, %cst_5 [0] : vector<8x128xf32> to vector<128xf32>
    %11 = vector.shape_cast %10 : vector<128xf32> to vector<1x128xf32>
    %cst_6 = arith.constant 1.250000e-01 : f32
    %12 = vector.broadcast %cst_6 : f32 to vector<1x128xf32>
    %13 = arith.mulf %11, %12 : vector<1x128xf32>
    %c0_7 = arith.constant 0 : index
    %c0_8 = arith.constant 0 : index
    %14 = vector.load %arg5[%c0_7, %c0_8] : memref<2x128xf32, #tpu.memory_space<vmem>>, vector<1x128xf32>
    %cst_9 = arith.constant 9.99999974E-6 : f32
    %15 = vector.broadcast %cst_9 : f32 to vector<1x128xf32>
    %16 = arith.addf %13, %15 : vector<1x128xf32>
    %17 = math.rsqrt %16 : vector<1x128xf32>
    %18 = arith.mulf %14, %17 : vector<1x128xf32>
    %c1 = arith.constant 1 : index
    %c0_10 = arith.constant 0 : index
    %19 = vector.load %arg5[%c1, %c0_10] : memref<2x128xf32, #tpu.memory_space<vmem>>, vector<1x128xf32>
    %20 = arith.mulf %6, %18 : vector<1x128xf32>
    %21 = arith.subf %19, %20 : vector<1x128xf32>
    %22 = vector.broadcast %18 : vector<1x128xf32> to vector<8x128xf32>
    %23 = arith.mulf %2, %22 : vector<8x128xf32>
    %24 = vector.broadcast %21 : vector<1x128xf32> to vector<8x128xf32>
    %25 = arith.addf %23, %24 : vector<8x128xf32>
    %cst_11 = arith.constant 0.000000e+00 : f32
    %26 = vector.broadcast %cst_11 : f32 to vector<8x128xf32>
    %27 = arith.maximumf %25, %26 : vector<8x128xf32>
    %c0_12 = arith.constant 0 : index
    %c0_13 = arith.constant 0 : index
    %28 = vector.load %arg6[%c0_12, %c0_13] : memref<128x128xf32, #tpu.memory_space<vmem>>, vector<128x128xf32>
    %cst_14 = arith.constant dense<0.000000e+00> : vector<8x128xf32>
    %29 = tpu.matmul %27, %28, %cst_14 {dimension_numbers = #tpu.dot_dimension_numbers<[1], [0], [0], [1], [0, 0, 1, 1], [], []>} : vector<8x128xf32>, vector<128x128xf32>, vector<8x128xf32> -> vector<8x128xf32>
    %c0_i32 = arith.constant 0 : i32
    %30 = arith.cmpi eq, %arg1, %c0_i32 : i32
    %31 = arith.extui %30 : i1 to i32
    %c0_i32_15 = arith.constant 0 : i32
    %32 = arith.cmpi ne, %31, %c0_i32_15 : i32
    scf.if %32 {
      %c0_19 = arith.constant 0 : index
      %c0_20 = arith.constant 0 : index
      %39 = vector.load %arg8[%c0_19, %c0_20] : memref<8x128xf32, #tpu.memory_space<vmem>>, vector<8x128xf32>
      tpu.vector_store %arg8[%c0_19, %c0_20], %29 {strides = array<i32>} : memref<8x128xf32, #tpu.memory_space<vmem>>, vector<8x128xf32>,
    } else {
    }
    %c0_i32_16 = arith.constant 0 : i32
    %33 = arith.cmpi sgt, %arg1, %c0_i32_16 : i32
    %34 = arith.extui %33 : i1 to i32
    %c0_i32_17 = arith.constant 0 : i32
    %35 = arith.cmpi ne, %34, %c0_i32_17 : i32
    scf.if %35 {
      %c0_19 = arith.constant 0 : index
      %c0_20 = arith.constant 0 : index
      %39 = vector.load %arg8[%c0_19, %c0_20] : memref<8x128xf32, #tpu.memory_space<vmem>>, vector<8x128xf32>
      %40 = arith.addf %39, %29 : vector<8x128xf32>
      %c0_21 = arith.constant 0 : index
      %c0_22 = arith.constant 0 : index
      %41 = vector.load %arg8[%c0_21, %c0_22] : memref<8x128xf32, #tpu.memory_space<vmem>>, vector<8x128xf32>
      tpu.vector_store %arg8[%c0_21, %c0_22], %40 {strides = array<i32>} : memref<8x128xf32, #tpu.memory_space<vmem>>, vector<8x128xf32>,
    } else {
    }
    %c1_i32 = arith.constant 1 : i32
    %36 = arith.cmpi eq, %arg1, %c1_i32 : i32
    %37 = arith.extui %36 : i1 to i32
    %c0_i32_18 = arith.constant 0 : i32
    %38 = arith.cmpi ne, %37, %c0_i32_18 : i32
    scf.if %38 {
      %c0_19 = arith.constant 0 : index
      %c0_20 = arith.constant 0 : index
      %39 = vector.load %arg8[%c0_19, %c0_20] : memref<8x128xf32, #tpu.memory_space<vmem>>, vector<8x128xf32>
      %cst_21 = arith.constant dense<0.000000e+00> : vector<128xf32>
      %40 = vector.multi_reduction <add>, %39, %cst_21 [0] : vector<8x128xf32> to vector<128xf32>
      %41 = vector.shape_cast %40 : vector<128xf32> to vector<1x128xf32>
      %cst_22 = arith.constant 1.250000e-01 : f32
      %42 = vector.broadcast %cst_22 : f32 to vector<1x128xf32>
      %43 = arith.mulf %41, %42 : vector<1x128xf32>
      %44 = vector.broadcast %43 : vector<1x128xf32> to vector<8x128xf32>
      %45 = arith.subf %39, %44 : vector<8x128xf32>
      %46 = arith.mulf %45, %45 : vector<8x128xf32>
      %cst_23 = arith.constant dense<0.000000e+00> : vector<128xf32>
      %47 = vector.multi_reduction <add>, %46, %cst_23 [0] : vector<8x128xf32> to vector<128xf32>
      %48 = vector.shape_cast %47 : vector<128xf32> to vector<1x128xf32>
      %cst_24 = arith.constant 1.250000e-01 : f32
      %49 = vector.broadcast %cst_24 : f32 to vector<1x128xf32>
      %50 = arith.mulf %48, %49 : vector<1x128xf32>
      %c0_25 = arith.constant 0 : index
      %c0_26 = arith.constant 0 : index
      %51 = vector.load %arg7[%c0_25, %c0_26] : memref<2x128xf32, #tpu.memory_space<vmem>>, vector<1x128xf32>
      %cst_27 = arith.constant 9.99999974E-6 : f32
      %52 = vector.broadcast %cst_27 : f32 to vector<1x128xf32>
      %53 = arith.addf %50, %52 : vector<1x128xf32>
      %54 = math.rsqrt %53 : vector<1x128xf32>
      %55 = arith.mulf %51, %54 : vector<1x128xf32>
      %c1_28 = arith.constant 1 : index
      %c0_29 = arith.constant 0 : index
      %56 = vector.load %arg7[%c1_28, %c0_29] : memref<2x128xf32, #tpu.memory_space<vmem>>, vector<1x128xf32>
      %57 = arith.mulf %43, %55 : vector<1x128xf32>
      %58 = arith.subf %56, %57 : vector<1x128xf32>
      %59 = vector.broadcast %55 : vector<1x128xf32> to vector<8x128xf32>
      %60 = arith.mulf %39, %59 : vector<8x128xf32>
      %61 = vector.broadcast %58 : vector<1x128xf32> to vector<8x128xf32>
      %62 = arith.addf %60, %61 : vector<8x128xf32>
      %c0_30 = arith.constant 0 : index
      %c0_31 = arith.constant 0 : index
      %63 = vector.load %arg3[%c0_30, %c0_31] : memref<8x128xf32, #tpu.memory_space<vmem>>, vector<8x128xf32>
      %64 = arith.addf %62, %63 : vector<8x128xf32>
      %cst_32 = arith.constant 0.000000e+00 : f32
      %65 = vector.broadcast %cst_32 : f32 to vector<8x128xf32>
      %66 = arith.maximumf %64, %65 : vector<8x128xf32>
      %c0_33 = arith.constant 0 : index
      %c0_34 = arith.constant 0 : index
      %67 = vector.load %arg8[%c0_33, %c0_34] : memref<8x128xf32, #tpu.memory_space<vmem>>, vector<8x128xf32>
      tpu.vector_store %arg8[%c0_33, %c0_34], %66 {strides = array<i32>} : memref<8x128xf32, #tpu.memory_space<vmem>>, vector<8x128xf32>,
    } else {
    }
    return
  }
  func.func @transform_0(%arg0: i32, %arg1: i32) -> (i32, i32) {
    %c0_i32 = arith.constant 0 : i32
    %c0_i32_0 = arith.constant 0 : i32
    %c0_i32_1 = arith.constant 0 : i32
    return %c0_i32, %c0_i32_0 : i32, i32
  }
  func.func @transform_1(%arg0: i32, %arg1: i32) -> (i32, i32) {
    %c0_i32 = arith.constant 0 : i32
    %c0_i32_0 = arith.constant 0 : i32
    return %c0_i32, %arg0 : i32, i32
  }
  func.func @transform_2(%arg0: i32, %arg1: i32) -> (i32, i32) {
    %c0_i32 = arith.constant 0 : i32
    %c0_i32_0 = arith.constant 0 : i32
    return %c0_i32, %arg1 : i32, i32
  }
  func.func @transform_3(%arg0: i32, %arg1: i32) -> (i32, i32) {
    %c0_i32 = arith.constant 0 : i32
    %c0_i32_0 = arith.constant 0 : i32
    return %c0_i32, %arg1 : i32, i32
  }
  func.func @transform_4(%arg0: i32, %arg1: i32) -> (i32, i32) {
    %c0_i32 = arith.constant 0 : i32
    return %arg1, %arg0 : i32, i32
  }
  func.func @transform_5(%arg0: i32, %arg1: i32) -> (i32, i32) {
    %c0_i32 = arith.constant 0 : i32
    %c0_i32_0 = arith.constant 0 : i32
    return %c0_i32, %arg0 : i32, i32
  }
  func.func @transform_6(%arg0: i32, %arg1: i32) -> (i32, i32) {
    %c0_i32 = arith.constant 0 : i32
    %c0_i32_0 = arith.constant 0 : i32
    return %c0_i32, %arg0 : i32, i32
  }
}

</mosaic_0001>

<llo_original>
// kernel: tpu_custom_call.1
$region0: #{tpu_custom_call.1}
  #allocation0 [shape = 'u32[]', space=smem, size = 0x4, offset = 0x4, fixed_abs, tag = 'smem constant byte address 0x4 - core index']
  #allocation1 [shape = 'u32[144,128]{1,0:T(1,128)}', space=vmem, size = 0x12000, scoped, tag = 'internal scratch']
  %s0 = inlined_call_operand.hbm [shape: f32[8,16], index: 0, kind: input, shape index: {}]
  %s1 = inlined_call_operand.hbm [shape: f32[8,128], index: 1, kind: input, shape index: {}]
  %s2 = inlined_call_operand.hbm [shape: f32[16,256], index: 2, kind: input, shape index: {}]
  %s3 = inlined_call_operand.vmem [shape: f32[2,256], index: 3, kind: input, shape index: {}]
  %s4 = inlined_call_operand.hbm [shape: f32[256,128], index: 4, kind: input, shape index: {}]
  %s5 = inlined_call_operand.vmem [shape: f32[2,128], index: 5, kind: input, shape index: {}]
  %s6 = inlined_call_operand.hbm [shape: f32[8,128], index: 6, kind: output, shape index: {}]
  %s7 = sld [smem:[#allocation0]]
  $region85: #{tpu_custom_call.1} parent=0
    _
  %s9 = ssub.s32 1, %s7
  %s10 = scalar_select 0, %s9, %s7
  $region1: #{tpu_custom_call.1} parent=0
    #allocation2 [shape = 'u8[4096]{0}', space=vmem, size = 0x1000, scoped, tag = 'input window, operand 0, single buffered']
    #allocation3 [shape = 's32[2]{0}', space=sflag, size = 0x8, scoped, tag = 'scoped memory for tpu_custom_call.1']
    #allocation4 [shape = 's32[2]{0}', space=sflag, size = 0x8, scoped, tag = 'scoped memory for tpu_custom_call.1']
    #allocation5 [shape = 'u8[4096]{0}', space=vmem, size = 0x1000, scoped, tag = 'input window, operand 1, single buffered']
    #allocation6 [shape = 's32[1]{0}', space=sflag, size = 0x4, scoped, tag = 'scoped memory for tpu_custom_call.1']
    #allocation7 [shape = 'u8[16384]{0}', space=vmem, size = 0x4000, scoped, tag = 'input window, operand 2']
    #allocation8 [shape = 'u8[131072]{0}', space=vmem, size = 0x20000, scoped, tag = 'input window, operand 4']
    #allocation9 [shape = 'u8[4096]{0}', space=vmem, size = 0x1000, scoped, tag = 'output window, operand 0, single buffered']
    %11 = vsyncpa [#allocation3], 0
    %12 = vsyncpa [#allocation6], 0
    %13 = vsyncpa [#allocation4], 0
    loop: start=0, step=1, limit=4
    $region2: #{tpu_custom_call.1} parent=1 // loop_pre_header
      _
    $region3: #{tpu_custom_call.1} parent=1 // loop_header
      %s15 = sphi 0, %s19
      %p16 = scmp.ge.s32.totalorder %s15, 4
      %s22 = sphi 0, %s34
      %s23 = sphi 0, %s30
      %s24 = sphi 0, %s22
      %s25 = sphi 0, %s23
      %s26 = sphi 0, %s24
      %s27 = sphi 0, %s25
      %s35 = sphi 0, %s35
      %s37 = sphi 0, %s35
      %s38 = sphi 0, %s37
      %s52 = sphi 0, %s38
      %s58 = sphi 0, %s60
      %s61 = sphi 0, %s58
      %s62 = sphi 0, %s61
      %s78 = sphi 0, %s62
      %s84 = sphi 0, %s86
      %s87 = sphi 0, %s84
      %s88 = sphi 0, %s87
      %s104 = sphi 0, %s88
      %s110 = sphi 0, %s112
      %s113 = sphi 0, %s110
      %s114 = sphi 0, %s113
      %s130 = sphi 0, %s114
      %s138 = sphi 0, %s140
      %s141 = sphi 0, %s138
      %s142 = sphi 0, %s141
      %s158 = sphi 0, %s142
      %s164 = sphi 0, %s166
      %s167 = sphi 0, %s164
      %s168 = sphi 0, %s167
      %s184 = sphi 0, %s168
      %s190 = sphi 0, %s192
      %s193 = sphi 0, %s190
      %s194 = sphi 0, %s193
      %s210 = sphi 0, %s194
    $region4: #{tpu_custom_call.1} parent=1 // loop_header_branch
      %18 = sbr.rel (%p16) target = $region8
    $region5: #{tpu_custom_call.1} parent=1 // loop_body
      %s20 = ssub.s32 %s15, 1
      %s21 = ssub.s32 %s15, 2
      %s28 = sadd.s32 1, %s23
      %p29 = scmp.ge.s32.totalorder %s28, 2
      %s30 = scalar_select %p29, 0, %s28
      %s31 = sadd.s32 1, %s22
      %s32 = scalar_select %p29, %s31, %s22
      %p33 = scmp.ge.s32.totalorder %s32, 1
      %s34 = scalar_select %p33, 0, %s32
      %s36 = sadd.s32 %s35, 1
      %p39 = scmp.eq.s32.totalorder %s15, 1
      %p40 = scmp.ne.s32.totalorder %s35, %s37
      %p41 = scmp.eq.s32.totalorder %s15, 0
      %p42 = por %p40, %p41
      %p43 = scmp.ne.s32.totalorder %s35, %s37
      %p44 = scmp.eq.s32.totalorder %s20, 1
      %p45 = por %p43, %p44
      %p46 = scmp.ne.s32.totalorder %s37, %s38
      %p47 = scmp.eq.s32.totalorder %s20, 0
      %p48 = por %p46, %p47
      %p49 = scmp.ne.s32.totalorder %s37, %s38
      %p50 = scmp.eq.s32.totalorder %s21, 1
      %p51 = por %p49, %p50
      %p53 = scmp.ne.s32.totalorder %s38, %s52
      %p54 = scmp.eq.s32.totalorder %s21, 0
      %p55 = por %p53, %p54
      %s56 = ssub.s32 %s22, %s34
      %p57 = scmp.eq.s32.totalorder %s56, 0
      %s59 = sadd.s32 %s58, 1
      %s60 = scalar_select %p57, %s58, %s59
      %p63 = pneg %p57
      %p64 = scmp.eq.s32.totalorder %s15, 1
      %p65 = por %p63, %p64
      %p66 = scmp.ne.s32.totalorder %s58, %s61
      %p67 = scmp.eq.s32.totalorder %s15, 0
      %p68 = por %p66, %p67
      %p69 = scmp.ne.s32.totalorder %s58, %s61
      %p70 = scmp.eq.s32.totalorder %s20, 1
      %p71 = por %p69, %p70
      %p72 = scmp.ne.s32.totalorder %s61, %s62
      %p73 = scmp.eq.s32.totalorder %s20, 0
      %p74 = por %p72, %p73
      %p75 = scmp.ne.s32.totalorder %s61, %s62
      %p76 = scmp.eq.s32.totalorder %s21, 1
      %p77 = por %p75, %p76
      %p79 = scmp.ne.s32.totalorder %s62, %s78
      %p80 = scmp.eq.s32.totalorder %s21, 0
      %p81 = por %p79, %p80
      %s82 = ssub.s32 %s23, %s30
      %p83 = scmp.eq.s32.totalorder %s82, 0
      %s85 = sadd.s32 %s84, 1
      %s86 = scalar_select %p83, %s84, %s85
      %p89 = pneg %p83
      %p90 = scmp.eq.s32.totalorder %s15, 1
      %p91 = por %p89, %p90
      %p92 = scmp.ne.s32.totalorder %s84, %s87
      %p93 = scmp.eq.s32.totalorder %s15, 0
      %p94 = por %p92, %p93
      %p95 = scmp.ne.s32.totalorder %s84, %s87
      %p96 = scmp.eq.s32.totalorder %s20, 1
      %p97 = por %p95, %p96
      %p98 = scmp.ne.s32.totalorder %s87, %s88
      %p99 = scmp.eq.s32.totalorder %s20, 0
      %p100 = por %p98, %p99
      %p101 = scmp.ne.s32.totalorder %s87, %s88
      %p102 = scmp.eq.s32.totalorder %s21, 1
      %p103 = por %p101, %p102
      %p105 = scmp.ne.s32.totalorder %s88, %s104
      %p106 = scmp.eq.s32.totalorder %s21, 0
      %p107 = por %p105, %p106
      %s108 = ssub.s32 %s23, %s30
      %p109 = scmp.eq.s32.totalorder %s108, 0
      %s111 = sadd.s32 %s110, 1
      %s112 = scalar_select %p109, %s110, %s111
      %p115 = pneg %p109
      %p116 = scmp.eq.s32.totalorder %s15, 1
      %p117 = por %p115, %p116
      %p118 = scmp.ne.s32.totalorder %s110, %s113
      %p119 = scmp.eq.s32.totalorder %s15, 0
      %p120 = por %p118, %p119
      %p121 = scmp.ne.s32.totalorder %s110, %s113
      %p122 = scmp.eq.s32.totalorder %s20, 1
      %p123 = por %p121, %p122
      %p124 = scmp.ne.s32.totalorder %s113, %s114
      %p125 = scmp.eq.s32.totalorder %s20, 0
      %p126 = por %p124, %p125
      %p127 = scmp.ne.s32.totalorder %s113, %s114
      %p128 = scmp.eq.s32.totalorder %s21, 1
      %p129 = por %p127, %p128
      %p131 = scmp.ne.s32.totalorder %s114, %s130
      %p132 = scmp.eq.s32.totalorder %s21, 0
      %p133 = por %p131, %p132
      %s134 = ssub.s32 %s23, %s30
      %s135 = ssub.s32 %s22, %s34
      %s136 = sor.u32 %s134, %s135
      %p137 = scmp.eq.s32.totalorder %s136, 0
      %s139 = sadd.s32 %s138, 1
      %s140 = scalar_select %p137, %s138, %s139
      %p143 = pneg %p137
      %p144 = scmp.eq.s32.totalorder %s15, 1
      %p145 = por %p143, %p144
      %p146 = scmp.ne.s32.totalorder %s138, %s141
      %p147 = scmp.eq.s32.totalorder %s15, 0
      %p148 = por %p146, %p147
      %p149 = scmp.ne.s32.totalorder %s138, %s141
      %p150 = scmp.eq.s32.totalorder %s20, 1
      %p151 = por %p149, %p150
      %p152 = scmp.ne.s32.totalorder %s141, %s142
      %p153 = scmp.eq.s32.totalorder %s20, 0
      %p154 = por %p152, %p153
      %p155 = scmp.ne.s32.totalorder %s141, %s142
      %p156 = scmp.eq.s32.totalorder %s21, 1
      %p157 = por %p155, %p156
      %p159 = scmp.ne.s32.totalorder %s142, %s158
      %p160 = scmp.eq.s32.totalorder %s21, 0
      %p161 = por %p159, %p160
      %s162 = ssub.s32 %s22, %s34
      %p163 = scmp.eq.s32.totalorder %s162, 0
      %s165 = sadd.s32 %s164, 1
      %s166 = scalar_select %p163, %s164, %s165
      %p169 = pneg %p163
      %p170 = scmp.eq.s32.totalorder %s15, 1
      %p171 = por %p169, %p170
      %p172 = scmp.ne.s32.totalorder %s164, %s167
      %p173 = scmp.eq.s32.totalorder %s15, 0
      %p174 = por %p172, %p173
      %p175 = scmp.ne.s32.totalorder %s164, %s167
      %p176 = scmp.eq.s32.totalorder %s20, 1
      %p177 = por %p175, %p176
      %p178 = scmp.ne.s32.totalorder %s167, %s168
      %p179 = scmp.eq.s32.totalorder %s20, 0
      %p180 = por %p178, %p179
      %p181 = scmp.ne.s32.totalorder %s167, %s168
      %p182 = scmp.eq.s32.totalorder %s21, 1
      %p183 = por %p181, %p182
      %p185 = scmp.ne.s32.totalorder %s168, %s184
      %p186 = scmp.eq.s32.totalorder %s21, 0
      %p187 = por %p185, %p186
      %s188 = ssub.s32 %s22, %s34
      %p189 = scmp.eq.s32.totalorder %s188, 0
      %s191 = sadd.s32 %s190, 1
      %s192 = scalar_select %p189, %s190, %s191
      %p195 = pneg %p189
      %p196 = scmp.eq.s32.totalorder %s15, 1
      %p197 = por %p195, %p196
      %p198 = scmp.ne.s32.totalorder %s190, %s193
      %p199 = scmp.eq.s32.totalorder %s15, 0
      %p200 = por %p198, %p199
      %p201 = scmp.ne.s32.totalorder %s190, %s193
      %p202 = scmp.eq.s32.totalorder %s20, 1
      %p203 = por %p201, %p202
      %p204 = scmp.ne.s32.totalorder %s193, %s194
      %p205 = scmp.eq.s32.totalorder %s20, 0
      %p206 = por %p204, %p205
      %p207 = scmp.ne.s32.totalorder %s193, %s194
      %p208 = scmp.eq.s32.totalorder %s21, 1
      %p209 = por %p207, %p208
      %p211 = scmp.ne.s32.totalorder %s194, %s210
      %p212 = scmp.eq.s32.totalorder %s21, 0
      %p213 = por %p211, %p212
      %p214 = scmp.le.s32.totalorder 1, %s15
      %p215 = scmp.lt.s32.totalorder %s15, 3
      %p216 = pnand %p214, %p215
      %p217 = pneg %p216
      // Predicated region
      $region9: #{tpu_custom_call.1} parent=5 // pred_check
        _
      $region10: #{tpu_custom_call.1} parent=5 // pred_check_branch
        %219 = sbr.rel (%p216) target = $region12
      $region11: #{tpu_custom_call.1} parent=5 // pred_region
        %s220 = ssub.s32 %s15, 1
        // Predicated region
        $region13: #{tpu_custom_call.1} parent=11 // pred_check
          %p221 = pneg %p48
        $region14: #{tpu_custom_call.1} parent=11 // pred_check_branch
          %223 = sbr.rel (%p221) target = $region16
        $region15: #{tpu_custom_call.1} parent=11 // pred_region
          %s225 = ssub.s32 128, 128
          %226 = vsyncadd [#allocation3], %s225
          %s228 = sshll.u32 [#allocation2], 4
          %s229 = int_to_ptr.vmem [resolvable:$true] %s228
          %231 = dma.hbm_to_vmem [thread:$0]  %s0, 128, %s229, [#allocation3]
        $region16: #{tpu_custom_call.1} parent=11 // pred_fallthru
          _
        // Predicated region
        $region17: #{tpu_custom_call.1} parent=11 // pred_check
          %p232 = pneg %p74
        $region18: #{tpu_custom_call.1} parent=11 // pred_check_branch
          %234 = sbr.rel (%p232) target = $region20
        $region19: #{tpu_custom_call.1} parent=11 // pred_region
          %s236 = ssub.s32 128, 128
          %237 = vsyncadd [#allocation6], %s236
          %s238 = smul.addr %s24, 128
          %s239 = scalar_lea.hbm %s1, %s238
          %s241 = sshll.u32 [#allocation5], 4
          %s242 = int_to_ptr.vmem [resolvable:$true] %s241
          %244 = dma.hbm_to_vmem [thread:$0]  %s239, 128, %s242, [#allocation6]
        $region20: #{tpu_custom_call.1} parent=11 // pred_fallthru
          _
        // Predicated region
        $region21: #{tpu_custom_call.1} parent=11 // pred_check
          %p245 = pneg %p180
        $region22: #{tpu_custom_call.1} parent=11 // pred_check_branch
          %247 = sbr.rel (%p245) target = $region24
        $region23: #{tpu_custom_call.1} parent=11 // pred_region
          %p248 = scmp.lt.s32.totalorder %s24, 0
          %s249 = scalar_select %p248, %s24, 0
          %s250 = smul.addr %s249, 2
          %s251 = scalar_lea.vmem %s5, %s250
        $region24: #{tpu_custom_call.1} parent=11 // pred_fallthru
          _
      $region12: #{tpu_custom_call.1} parent=5 // pred_fallthru
        _
      %p252 = scmp.lt.s32.totalorder %s15, 2
      // Predicated region
      $region25: #{tpu_custom_call.1} parent=5 // pred_check
        %p253 = pneg %p252
      $region26: #{tpu_custom_call.1} parent=5 // pred_check_branch
        %255 = sbr.rel (%p253) target = $region28
      $region27: #{tpu_custom_call.1} parent=5 // pred_region
        // Predicated region
        $region29: #{tpu_custom_call.1} parent=27 // pred_check
          %p256 = pneg %p94
        $region30: #{tpu_custom_call.1} parent=27 // pred_check_branch
          %258 = sbr.rel (%p256) target = $region32
        $region31: #{tpu_custom_call.1} parent=27 // pred_region
          %s259 = sand.u32 %s15, 1
          %s260 = scalar_lea.sflag [#allocation3], %s259
          %s261 = sand.u32 %s84, 1
          %s262 = smul.addr %s261, 16
          %s263 = scalar_lea.vmem [#allocation7], %s262
          %s265 = ssub.s32 256, 256
          %266 = vsyncadd %s260, %s265
          %s267 = smul.addr %s23, 128
          %s268 = scalar_lea.hbm %s2, %s267
          %s269 = sshll.u32 %s263, 4
          %s270 = int_to_ptr.vmem [resolvable:$true] %s269
          %275 = dma.hbm_to_vmem [thread:$0]  %s268, 256, %s270, %s260, 256, 128, 8
        $region32: #{tpu_custom_call.1} parent=27 // pred_fallthru
          _
        // Predicated region
        $region33: #{tpu_custom_call.1} parent=27 // pred_check
          %p276 = pneg %p120
        $region34: #{tpu_custom_call.1} parent=27 // pred_check_branch
          %278 = sbr.rel (%p276) target = $region36
        $region35: #{tpu_custom_call.1} parent=27 // pred_region
          %p279 = scmp.lt.s32.totalorder %s23, 1
          %s280 = scalar_select %p279, %s23, 1
          %s281 = smul.addr %s280, 2
          %s282 = scalar_lea.vmem %s3, %s281
        $region36: #{tpu_custom_call.1} parent=27 // pred_fallthru
          _
        // Predicated region
        $region37: #{tpu_custom_call.1} parent=27 // pred_check
          %p283 = pneg %p148
        $region38: #{tpu_custom_call.1} parent=27 // pred_check_branch
          %285 = sbr.rel (%p283) target = $region40
        $region39: #{tpu_custom_call.1} parent=27 // pred_region
          %s286 = sand.u32 %s15, 1
          %s287 = scalar_lea.sflag [#allocation3], %s286
          %s288 = sand.u32 %s138, 1
          %s289 = smul.addr %s288, 128
          %s290 = scalar_lea.vmem [#allocation8], %s289
          %s291 = smul.u32 16, %s23
          %s293 = ssub.s32 2048, 2048
          %294 = vsyncadd %s287, %s293
          %s295 = sadd.s32 %s22, %s291
          %s296 = smul.addr %s295, 128
          %s297 = scalar_lea.hbm %s4, %s296
          %s298 = sshll.u32 %s290, 4
          %s299 = int_to_ptr.vmem [resolvable:$true] %s298
          %304 = dma.hbm_to_vmem [thread:$0]  %s297, 2048, %s299, %s287, 128, 128, 8
        $region40: #{tpu_custom_call.1} parent=27 // pred_fallthru
          _
      $region28: #{tpu_custom_call.1} parent=5 // pred_fallthru
        _
      %p305 = scmp.le.s32.totalorder 1, %s15
      %p306 = scmp.lt.s32.totalorder %s15, 3
      %p307 = pnand %p305, %p306
      %p308 = pneg %p307
      // Predicated region
      $region41: #{tpu_custom_call.1} parent=5 // pred_check
        _
      $region42: #{tpu_custom_call.1} parent=5 // pred_check_branch
        %310 = sbr.rel (%p307) target = $region44
      $region43: #{tpu_custom_call.1} parent=5 // pred_region
        %s311 = ssub.s32 %s15, 1
        // Predicated region
        $region45: #{tpu_custom_call.1} parent=43 // pred_check
          %p312 = pneg %p48
        $region46: #{tpu_custom_call.1} parent=43 // pred_check_branch
          %314 = sbr.rel (%p312) target = $region48
        $region47: #{tpu_custom_call.1} parent=43 // pred_region
          %315 = dma.done [#allocation3], 128
        $region48: #{tpu_custom_call.1} parent=43 // pred_fallthru
          _
        // Predicated region
        $region49: #{tpu_custom_call.1} parent=43 // pred_check
          %p316 = pneg %p74
        $region50: #{tpu_custom_call.1} parent=43 // pred_check_branch
          %318 = sbr.rel (%p316) target = $region52
        $region51: #{tpu_custom_call.1} parent=43 // pred_region
          %319 = dma.done [#allocation6], 128
        $region52: #{tpu_custom_call.1} parent=43 // pred_fallthru
          _
        %s320 = sand.u32 %s20, 1
        %s321 = scalar_lea.sflag [#allocation3], %s320
        %s322 = sand.u32 %s87, 1
        %s323 = smul.addr %s322, 16
        %s324 = scalar_lea.vmem [#allocation7], %s323
        // Predicated region
        $region53: #{tpu_custom_call.1} parent=43 // pred_check
          %p325 = pneg %p100
        $region54: #{tpu_custom_call.1} parent=43 // pred_check_branch
          %327 = sbr.rel (%p325) target = $region56
        $region55: #{tpu_custom_call.1} parent=43 // pred_region
          %328 = dma.done %s321, 256
        $region56: #{tpu_custom_call.1} parent=43 // pred_fallthru
          _
        %s329 = sand.u32 %s20, 1
        %s330 = scalar_lea.sflag [#allocation3], %s329
        %s331 = sand.u32 %s141, 1
        %s332 = smul.addr %s331, 128
        %s333 = scalar_lea.vmem [#allocation8], %s332
        // Predicated region
        $region57: #{tpu_custom_call.1} parent=43 // pred_check
          %p334 = pneg %p154
        $region58: #{tpu_custom_call.1} parent=43 // pred_check_branch
          %336 = sbr.rel (%p334) target = $region60
        $region59: #{tpu_custom_call.1} parent=43 // pred_region
          %337 = dma.done %s330, 2048
        $region60: #{tpu_custom_call.1} parent=43 // pred_fallthru
          _
        %p338 = pneg %p48
        %p339 = pneg %p45
        %p340 = pneg %p74
        %p341 = pneg %p71
        %s342 = sand.u32 %s20, 1
        %s343 = scalar_lea.sflag [#allocation3], %s342
        %s344 = sand.u32 %s87, 1
        %s345 = smul.addr %s344, 16
        %s346 = scalar_lea.vmem [#allocation7], %s345
        %p347 = pneg %p100
        %p348 = pneg %p97
        %p349 = scmp.lt.s32.totalorder %s25, 1
        %s350 = scalar_select %p349, %s25, 1
        %s351 = smul.addr %s350, 2
        %s352 = scalar_lea.vmem %s3, %s351
        %p353 = pneg %p126
        %p354 = pneg %p123
        %s355 = sand.u32 %s20, 1
        %s356 = scalar_lea.sflag [#allocation3], %s355
        %s357 = sand.u32 %s141, 1
        %s358 = smul.addr %s357, 128
        %s359 = scalar_lea.vmem [#allocation8], %s358
        %p360 = pneg %p154
        %p361 = pneg %p151
        %p362 = scmp.lt.s32.totalorder %s24, 0
        %s363 = scalar_select %p362, %s24, 0
        %s364 = smul.addr %s363, 2
        %s365 = scalar_lea.vmem %s5, %s364
        %p366 = pneg %p180
        %p367 = pneg %p177
        %p368 = pneg %p206
        %p369 = pneg %p203
        %p370 = scmp.lt.s32.totalorder %s25, 1
        %s371 = scalar_select %p370, %s25, 1
        %s372 = smul.addr %s371, 2
        %s373 = scalar_lea.vmem %s3, %s372
        %s374 = smul.u32 16, %s25
        %p375 = scmp.lt.s32.totalorder %s24, 0
        %s376 = scalar_select %p375, %s24, 0
        %s377 = smul.addr %s376, 2
        %s378 = scalar_lea.vmem %s5, %s377
        %v379 = vld [vmem:[#allocation2] sm:$0xff]
        %v380 = vld [vmem:[%s324] sm:$0xff]
        %v381 = vld [vmem:[%s324 + $0x8] sm:$0xff]
        %vm382 = vcmask 130048
        %v384 = vsel %vm382, %v379, 0
        %386 = vmatprep.subr.mxu0 0.0
        %387 = vmatpush1.msra.mxu0 %v380
        %388 = vmatprep.subr.mxu0 0.0
        %389 = vmatpush1.msra.mxu0 %v381
        %390 = vmatprep.subr.mxu0 0.0
        %391 = vmatpush1.msra.mxu0 0.0
        %392 = vmatprep.subr.mxu0 0.0
        %393 = vmatpush1.msra.mxu0 0.0
        %394 = vmatprep.subr.mxu0 0.0
        %395 = vmatpush1.msra.mxu0 0.0
        %396 = vmatprep.subr.mxu0 0.0
        %397 = vmatpush1.msra.mxu0 0.0
        %398 = vmatprep.subr.mxu0 0.0
        %399 = vmatpush1.msra.mxu0 0.0
        %400 = vmatprep.subr.mxu0 0.0
        %401 = vmatpush1.msra.mxu0 0.0
        %402 = vmatprep.subr.mxu0 0.0
        %403 = vmatpush1.msra.mxu0 0.0
        %404 = vmatprep.subr.mxu0 0.0
        %405 = vmatpush1.msra.mxu0 0.0
        %406 = vmatprep.subr.mxu0 0.0
        %407 = vmatpush1.msra.mxu0 0.0
        %408 = vmatprep.subr.mxu0 0.0
        %409 = vmatpush1.msra.mxu0 0.0
        %410 = vmatprep.subr.mxu0 0.0
        %411 = vmatpush1.msra.mxu0 0.0
        %412 = vmatprep.subr.mxu0 0.0
        %413 = vmatpush1.msra.mxu0 0.0
        %414 = vmatprep.subr.mxu0 0.0
        %415 = vmatpush1.msra.mxu0 0.0
        %416 = vmatprep.subr.mxu0 0.0
        %417 = vmatpush1.msra.mxu0 0.0
        %418 = vmatprep.subr.mxu0 0.0
        %419 = vmatpush1.msra.mxu0 0.0
        %420 = vmatprep.subr.mxu0 0.0
        %421 = vmatpush1.msra.mxu0 0.0
        %422 = vmatprep.subr.mxu0 0.0
        %423 = vmatpush1.msra.mxu0 0.0
        %424 = vmatprep.subr.mxu0 0.0
        %425 = vmatpush1.msra.mxu0 0.0
        %426 = vmatprep.subr.mxu0 0.0
        %427 = vmatpush1.msra.mxu0 0.0
        %428 = vmatprep.subr.mxu0 0.0
        %429 = vmatpush1.msra.mxu0 0.0
        %430 = vmatprep.subr.mxu0 0.0
        %431 = vmatpush1.msra.mxu0 0.0
        %432 = vmatprep.subr.mxu0 0.0
        %433 = vmatpush1.msra.mxu0 0.0
        %434 = vmatprep.subr.mxu0 0.0
        %435 = vmatpush1.msra.mxu0 0.0
        %436 = vmatprep.subr.mxu0 0.0
        %437 = vmatpush1.msra.mxu0 0.0
        %438 = vmatprep.subr.mxu0 0.0
        %439 = vmatpush1.msra.mxu0 0.0
        %440 = vmatprep.subr.mxu0 0.0
        %441 = vmatpush1.msra.mxu0 0.0
        %442 = vmatprep.subr.mxu0 0.0
        %443 = vmatpush1.msra.mxu0 0.0
        %444 = vmatprep.subr.mxu0 0.0
        %445 = vmatpush1.msra.mxu0 0.0
        %446 = vmatprep.subr.mxu0 0.0
        %447 = vmatpush1.msra.mxu0 0.0
        %448 = vmatprep.subr.mxu0 0.0
        %449 = vmatpush1.msra.mxu0 0.0
        %450 = vmatprep.mubr.f32.mxu0 0.0
        %451 = vmatmul.mubr.f32.gmra.mrb[0].mxu0 %v384
        %v452 = vpop.f32.mrb[0].mxu0
        %v453 = vadd.f32 0.0, %v452
        %v454 = vpop.f32.mrb[0].mxu0
        %455 = vdwg.mxu0
        %v456 = vrot.slane %v453, 4
        %v457 = vadd.f32 %v453, %v456
        %v458 = vrot.slane %v457, 2
        %v459 = vadd.f32 %v457, %v458
        %v460 = vrot.slane %v459, 1
        %v461 = vadd.f32 %v459, %v460
        %v462 = vmul.f32 %v461, 0.125
        %v463 = vsub.f32 %v453, %v462
        %v464 = vmul.f32 %v463, %v463
        %v465 = vrot.slane %v464, 4
        %v466 = vadd.f32 %v464, %v465
        %v467 = vrot.slane %v466, 2
        %v468 = vadd.f32 %v466, %v467
        %v469 = vrot.slane %v468, 1
        %v470 = vadd.f32 %v468, %v469
        %v471 = vmul.f32 %v470, 0.125
        %v472 = vld [vmem:[%s373] sm:$0x1]
        %v473 = vadd.f32 %v471, 1e-05
        %v474 = vrsqrt.pop %v473
        %v475 = vmul.f32 %v472, %v474
        %v476 = vld [vmem:[%s373 + $0x1] sm:$0x1]
        %v477 = vmul.f32 %v462, %v475
        %v478 = vsub.f32 %v476, %v477
        %v479 = vlaneseq
        %v480 = vshrl.u32 %v479, 7
        %v481 = vsub.s32 0, %v480
        %v482 = vrot.slane %v475, %v481
        %v483 = vmul.f32 %v453, %v482
        %v484 = vlaneseq
        %v485 = vshrl.u32 %v484, 7
        %v486 = vsub.s32 0, %v485
        %v487 = vrot.slane %v478, %v486
        %v488 = vadd.f32 %v483, %v487
        %v489 = vmax.f32 %v488, 0.0
        %v490 = vld [vmem:[%s333] sm:$0xff]
        %v491 = vld [vmem:[%s333 + $0x8] sm:$0xff]
        %v492 = vld [vmem:[%s333 + $0x10] sm:$0xff]
        %v493 = vld [vmem:[%s333 + $0x18] sm:$0xff]
        %v494 = vld [vmem:[%s333 + $0x20] sm:$0xff]
        %v495 = vld [vmem:[%s333 + $0x28] sm:$0xff]
        %v496 = vld [vmem:[%s333 + $0x30] sm:$0xff]
        %v497 = vld [vmem:[%s333 + $0x38] sm:$0xff]
        %v498 = vld [vmem:[%s333 + $0x40] sm:$0xff]
        %v499 = vld [vmem:[%s333 + $0x48] sm:$0xff]
        %v500 = vld [vmem:[%s333 + $0x50] sm:$0xff]
        %v501 = vld [vmem:[%s333 + $0x58] sm:$0xff]
        %v502 = vld [vmem:[%s333 + $0x60] sm:$0xff]
        %v503 = vld [vmem:[%s333 + $0x68] sm:$0xff]
        %v504 = vld [vmem:[%s333 + $0x70] sm:$0xff]
        %v505 = vld [vmem:[%s333 + $0x78] sm:$0xff]
        %506 = vmatprep.subr.mxu0 0.0
        %507 = vmatpush1.msra.mxu0 %v490
        %508 = vmatprep.subr.mxu0 0.0
        %509 = vmatpush1.msra.mxu0 %v491
        %510 = vmatprep.subr.mxu0 0.0
        %511 = vmatpush1.msra.mxu0 %v492
        %512 = vmatprep.subr.mxu0 0.0
        %513 = vmatpush1.msra.mxu0 %v493
        %514 = vmatprep.subr.mxu0 0.0
        %515 = vmatpush1.msra.mxu0 %v494
        %516 = vmatprep.subr.mxu0 0.0
        %517 = vmatpush1.msra.mxu0 %v495
        %518 = vmatprep.subr.mxu0 0.0
        %519 = vmatpush1.msra.mxu0 %v496
        %520 = vmatprep.subr.mxu0 0.0
        %521 = vmatpush1.msra.mxu0 %v497
        %522 = vmatprep.subr.mxu0 0.0
        %523 = vmatpush1.msra.mxu0 %v498
        %524 = vmatprep.subr.mxu0 0.0
        %525 = vmatpush1.msra.mxu0 %v499
        %526 = vmatprep.subr.mxu0 0.0
        %527 = vmatpush1.msra.mxu0 %v500
        %528 = vmatprep.subr.mxu0 0.0
        %529 = vmatpush1.msra.mxu0 %v501
        %530 = vmatprep.subr.mxu0 0.0
        %531 = vmatpush1.msra.mxu0 %v502
        %532 = vmatprep.subr.mxu0 0.0
        %533 = vmatpush1.msra.mxu0 %v503
        %534 = vmatprep.subr.mxu0 0.0
        %535 = vmatpush1.msra.mxu0 %v504
        %536 = vmatprep.subr.mxu0 0.0
        %537 = vmatpush1.msra.mxu0 %v505
        %538 = vmatprep.subr.mxu0 0.0
        %539 = vmatpush1.msra.mxu0 0.0
        %540 = vmatprep.subr.mxu0 0.0
        %541 = vmatpush1.msra.mxu0 0.0
        %542 = vmatprep.subr.mxu0 0.0
        %543 = vmatpush1.msra.mxu0 0.0
        %544 = vmatprep.subr.mxu0 0.0
        %545 = vmatpush1.msra.mxu0 0.0
        %546 = vmatprep.subr.mxu0 0.0
        %547 = vmatpush1.msra.mxu0 0.0
        %548 = vmatprep.subr.mxu0 0.0
        %549 = vmatpush1.msra.mxu0 0.0
        %550 = vmatprep.subr.mxu0 0.0
        %551 = vmatpush1.msra.mxu0 0.0
        %552 = vmatprep.subr.mxu0 0.0
        %553 = vmatpush1.msra.mxu0 0.0
        %554 = vmatprep.subr.mxu0 0.0
        %555 = vmatpush1.msra.mxu0 0.0
        %556 = vmatprep.subr.mxu0 0.0
        %557 = vmatpush1.msra.mxu0 0.0
        %558 = vmatprep.subr.mxu0 0.0
        %559 = vmatpush1.msra.mxu0 0.0
        %560 = vmatprep.subr.mxu0 0.0
        %561 = vmatpush1.msra.mxu0 0.0
        %562 = vmatprep.subr.mxu0 0.0
        %563 = vmatpush1.msra.mxu0 0.0
        %564 = vmatprep.subr.mxu0 0.0
        %565 = vmatpush1.msra.mxu0 0.0
        %566 = vmatprep.subr.mxu0 0.0
        %567 = vmatpush1.msra.mxu0 0.0
        %568 = vmatprep.subr.mxu0 0.0
        %569 = vmatpush1.msra.mxu0 0.0
        %570 = vmatprep.mubr.f32.mxu0 0.0
        %571 = vmatmul.mubr.f32.gmra.mrb[0].mxu0 %v489
        %v572 = vpop.f32.mrb[0].mxu0
        %v573 = vadd.f32 0.0, %v572
        %v574 = vpop.f32.mrb[0].mxu0
        %575 = vdwg.mxu0
        %p576 = scmp.eq.s32.totalorder %s25, 0
        // Predicated region
        $region61: #{tpu_custom_call.1} parent=43 // pred_check
          %p577 = pneg %p576
        $region62: #{tpu_custom_call.1} parent=43 // pred_check_branch
          %579 = sbr.rel (%p577) target = $region64
        $region63: #{tpu_custom_call.1} parent=43 // pred_region
          %580 = vst [vmem:[#allocation9] sm:$0xff] %v573
        $region64: #{tpu_custom_call.1} parent=43 // pred_fallthru
          _
        %p581 = scmp.gt.s32.totalorder %s25, 0
        // Predicated region
        $region65: #{tpu_custom_call.1} parent=43 // pred_check
          %p582 = pneg %p581
        $region66: #{tpu_custom_call.1} parent=43 // pred_check_branch
          %584 = sbr.rel (%p582) target = $region68
        $region67: #{tpu_custom_call.1} parent=43 // pred_region
          %v585 = vld [vmem:[#allocation9] sm:$0xff]
          %v586 = vadd.f32 %v585, %v573
          %587 = vst [vmem:[#allocation9] sm:$0xff] %v586
        $region68: #{tpu_custom_call.1} parent=43 // pred_fallthru
          _
        %p588 = scmp.eq.s32.totalorder %s25, 1
        // Predicated region
        $region69: #{tpu_custom_call.1} parent=43 // pred_check
          %p589 = pneg %p588
        $region70: #{tpu_custom_call.1} parent=43 // pred_check_branch
          %591 = sbr.rel (%p589) target = $region72
        $region71: #{tpu_custom_call.1} parent=43 // pred_region
          %v592 = vld [vmem:[#allocation9] sm:$0xff]
          %v593 = vrot.slane %v592, 4
          %v594 = vadd.f32 %v592, %v593
          %v595 = vrot.slane %v594, 2
          %v596 = vadd.f32 %v594, %v595
          %v597 = vrot.slane %v596, 1
          %v598 = vadd.f32 %v596, %v597
          %v599 = vmul.f32 %v598, 0.125
          %v600 = vsub.f32 %v592, %v599
          %v601 = vmul.f32 %v600, %v600
          %v602 = vrot.slane %v601, 4
          %v603 = vadd.f32 %v601, %v602
          %v604 = vrot.slane %v603, 2
          %v605 = vadd.f32 %v603, %v604
          %v606 = vrot.slane %v605, 1
          %v607 = vadd.f32 %v605, %v606
          %v608 = vmul.f32 %v607, 0.125
          %v609 = vld [vmem:[%s378] sm:$0x1]
          %v610 = vadd.f32 %v608, 1e-05
          %v611 = vrsqrt.pop %v610
          %v612 = vmul.f32 %v609, %v611
          %v613 = vld [vmem:[%s378 + $0x1] sm:$0x1]
          %v614 = vmul.f32 %v599, %v612
          %v615 = vsub.f32 %v613, %v614
          %v616 = vlaneseq
          %v617 = vshrl.u32 %v616, 7
          %v618 = vsub.s32 0, %v617
          %v619 = vrot.slane %v612, %v618
          %v620 = vmul.f32 %v592, %v619
          %v621 = vlaneseq
          %v622 = vshrl.u32 %v621, 7
          %v623 = vsub.s32 0, %v622
          %v624 = vrot.slane %v615, %v623
          %v625 = vadd.f32 %v620, %v624
          %v626 = vld [vmem:[#allocation5] sm:$0xff]
          %v627 = vadd.f32 %v625, %v626
          %v628 = vmax.f32 %v627, 0.0
          %629 = vst [vmem:[#allocation9] sm:$0xff] %v628
        $region72: #{tpu_custom_call.1} parent=43 // pred_fallthru
          _
        // Predicated region
        $region73: #{tpu_custom_call.1} parent=43 // pred_check
          %p630 = pneg %p203
        $region74: #{tpu_custom_call.1} parent=43 // pred_check_branch
          %632 = sbr.rel (%p630) target = $region76
        $region75: #{tpu_custom_call.1} parent=43 // pred_region
          %s634 = ssub.s32 128, 128
          %635 = vsyncadd [#allocation4], %s634
          %s636 = smul.addr %s24, 128
          %s637 = scalar_lea.hbm %s6, %s636
          %s639 = sshll.u32 [#allocation9], 4
          %s640 = int_to_ptr.vmem [resolvable:$true] %s639
          %642 = dma.vmem_to_hbm [thread:$0]  %s640, 128, %s637, [#allocation4]
        $region76: #{tpu_custom_call.1} parent=43 // pred_fallthru
          _
        // Predicated region
        $region77: #{tpu_custom_call.1} parent=43 // pred_check
          %p643 = pneg %p203
        $region78: #{tpu_custom_call.1} parent=43 // pred_check_branch
          %645 = sbr.rel (%p643) target = $region80
        $region79: #{tpu_custom_call.1} parent=43 // pred_region
          %646 = dma.done [#allocation4], 128
        $region80: #{tpu_custom_call.1} parent=43 // pred_fallthru
          _
      $region44: #{tpu_custom_call.1} parent=5 // pred_fallthru
        _
      %p647 = scmp.le.s32.totalorder 2, %s15
      // Predicated region
      $region81: #{tpu_custom_call.1} parent=5 // pred_check
        %p648 = pneg %p647
      $region82: #{tpu_custom_call.1} parent=5 // pred_check_branch
        %650 = sbr.rel (%p648) target = $region84
      $region83: #{tpu_custom_call.1} parent=5 // pred_region
        %s651 = ssub.s32 %s15, 2
      $region84: #{tpu_custom_call.1} parent=5 // pred_fallthru
        _
    $region6: #{tpu_custom_call.1} parent=1 // loop_footer
      %s19 = sadd.s32 1, %s15
    $region7: #{tpu_custom_call.1} parent=1 // loop_footer_branch
      %14 = sbr.rel target = $region3
    $region8: #{tpu_custom_call.1} parent=1 // loop_exit
      _
    %652 = vsyncpa [#allocation3], 1
    %s653 = scalar_lea.sflag [#allocation3], 1
    %654 = vsyncpa %s653, 1
    %655 = vsyncpa [#allocation6], 1
    %656 = vsyncpa [#allocation4], 1
    %s657 = scalar_lea.sflag [#allocation4], 1
    %658 = vsyncpa %s657, 1

</llo_original>
